<compile_context>
chip_gen: v6e
topology: v6e:2x2x1
jax: 0.10.0
libtpu: 0.0.40
codegen_flags: <defaults>
</compile_context>

<pallas_src>
import jax
import jax.numpy as jnp
from jax import lax
from jax.experimental import pallas as pl
from jax.experimental.pallas import tpu as pltpu


P_DROP = 0.1
_KEEP_SCALE = 1.0 / (1.0 - P_DROP)
# Drop an element iff the top-24 bits of its hash fall below this threshold.
_DROP_THRESH_24 = int(P_DROP * (1 << 24))

_LANES = 128      # lane (last) dim of the 2-D slab -> full-vreg, unmasked stores
_SUBLANES = 8     # row-block dim must stay a multiple of 8
_GRID = 4         # number of pipelined row blocks


def _dropout_kernel(seed_ref, x_ref, o_ref):
    x = x_ref[...]
    rows, cols = x.shape

    # Global flat element index of every element in this block.  Hashing the
    # global index (rather than re-seeding per block) makes the mask
    # independent of the tiling and distinct in every grid step.
    base = pl.program_id(0) * (rows * cols)
    row_ids = lax.broadcasted_iota(jnp.int32, (rows, cols), 0)
    col_ids = lax.broadcasted_iota(jnp.int32, (rows, cols), 1)
    idx = (base + row_ids * cols + col_ids).astype(jnp.uint32)

    # Counter-based PRNG: mix index with seed, then murmur3 fmix32 finalizer.
    key = (seed_ref[0].astype(jnp.uint32) * jnp.uint32(0x9E3779B9)
           + jnp.uint32(0x85EBCA6B))
    h = idx ^ key
    h = h ^ (h >> 16)
    h = h * jnp.uint32(0x85EBCA6B)
    h = h ^ (h >> 13)
    h = h * jnp.uint32(0xC2B2AE35)
    h = h ^ (h >> 16)

    # Compare on the top 24 bits as a *signed* int32 so correctness never
    # depends on an unsigned vector-compare lowering.
    r24 = (h >> 8).astype(jnp.int32)
    keep = r24 >= jnp.int32(_DROP_THRESH_24)

    scale = jnp.asarray(_KEEP_SCALE, dtype=x.dtype)
    o_ref[...] = jnp.where(keep, x * scale, jnp.zeros_like(x))


def dropout_pallas(x, seed):
    """Training-mode Dropout(p=0.1): zero with prob p, scale survivors by 1/(1-p)."""
    orig_shape = x.shape
    orig_dtype = x.dtype
    total = x.size

    # Flatten to a lane-dense (rows, 128) slab, padded (if needed) so the row
    # count splits evenly into _GRID blocks whose row dim is a multiple of 8.
    chunk = _LANES * _SUBLANES * _GRID
    padded_total = ((total + chunk - 1) // chunk) * chunk
    flat = x.reshape(-1)
    if padded_total != total:
        flat = jnp.pad(flat, (0, padded_total - total))
    rows = padded_total // _LANES
    block_rows = rows // _GRID
    x2d = flat.reshape(rows, _LANES)

    seed_arr = jnp.asarray([seed], dtype=jnp.int32)

    extra_kwargs = {}
    if jax.default_backend() == "tpu":
        cp_cls = (getattr(pltpu, "CompilerParams", None)
                  or getattr(pltpu, "TPUCompilerParams", None))
        if cp_cls is not None:
            extra_kwargs["compiler_params"] = cp_cls(
                dimension_semantics=("parallel",))
        # Dropout is elementwise/in-place safe: alias input slab to the output.
        extra_kwargs["input_output_aliases"] = {1: 0}

    out2d = pl.pallas_call(
        _dropout_kernel,
        out_shape=jax.ShapeDtypeStruct((rows, _LANES), orig_dtype),
        grid=(_GRID,),
        in_specs=[
            pl.BlockSpec(memory_space=pltpu.SMEM),                 # seed scalar
            pl.BlockSpec((block_rows, _LANES), lambda i: (i, 0)),  # x row block
        ],
        out_specs=pl.BlockSpec((block_rows, _LANES), lambda i: (i, 0)),
        **extra_kwargs,
    )(seed_arr, x2d)

    out = out2d.reshape(-1)
    if padded_total != total:
        out = out[:total]
    return out.reshape(orig_shape)


# TODO(synk): in a full model, fuse this dropout into the producing/consuming
# kernel (or skip it in eval mode) — standalone it is launch/DMA-bound.


if __name__ == "__main__":
    key = jax.random.PRNGKey(0)
    # Shape implied by the module's example input: [1, 256, 28, 28]
    x = jax.random.normal(key, (1, 256, 28, 28), dtype=jnp.float32)

    out = jax.block_until_ready(dropout_pallas(x, seed=0))

    # Sanity checks: shape/dtype match, survivors are exactly x * 1/(1-p),
    # empirical drop rate is in the right ballpark.
    assert out.shape == x.shape and out.dtype == x.dtype
    kept = out != 0
    assert jnp.allclose(out[kept], x[kept] * jnp.float32(_KEEP_SCALE),
                        rtol=1e-6, atol=1e-6)
    drop_frac = 1.0 - float(jnp.mean(kept.astype(jnp.float32)))
    assert 0.05 < drop_frac < 0.15, f"unexpected drop fraction {drop_frac}"

    print("KERNEL_OK")
</pallas_src>

<mosaic_0001>
module attributes {stable_mosaic.version = 11 : i64} {
  func.func @_dropout_kernel(%arg0: i32, %arg1: memref<1xi32, #tpu.memory_space<smem>>, %arg2: memref<392x128xf32, #tpu.memory_space<vmem>>, %arg3: memref<392x128xf32, #tpu.memory_space<vmem>>) attributes {dimension_semantics = [#tpu.dimension_semantics<arbitrary>], iteration_bounds = array<i64: 4>, scalar_prefetch = 0 : i64, scratch_operands = 0 : i64, tpu.core_type = #tpu.core_type<tc>, window_params = [{transform_indices = @transform_0, window_bounds = array<i64: 1>}, {transform_indices = @transform_1, window_bounds = array<i64: 392, 128>}, {transform_indices = @transform_2, window_bounds = array<i64: 392, 128>}]} {
    %c0 = arith.constant 0 : index
    %c0_0 = arith.constant 0 : index
    %0 = vector.load %arg2[%c0, %c0_0] : memref<392x128xf32, #tpu.memory_space<vmem>>, vector<392x128xf32>
    %c50176_i32 = arith.constant 50176 : i32
    %1 = arith.muli %arg0, %c50176_i32 : i32
    %2 = tpu.iota {dimensions = array<i32: 0>} : vector<392x128xi32>
    %3 = tpu.iota {dimensions = array<i32: 1>} : vector<392x128xi32>
    %c128_i32 = arith.constant 128 : i32
    %4 = vector.broadcast %c128_i32 : i32 to vector<392x128xi32>
    %5 = arith.muli %2, %4 : vector<392x128xi32>
    %6 = vector.broadcast %1 : i32 to vector<392x128xi32>
    %7 = arith.addi %6, %5 : vector<392x128xi32>
    %8 = arith.addi %7, %3 : vector<392x128xi32>
    %c0_1 = arith.constant 0 : index
    %9 = memref.load %arg1[%c0_1] : memref<1xi32, #tpu.memory_space<smem>>
    %c-1640531527_i32 = arith.constant -1640531527 : i32
    %10 = arith.muli %9, %c-1640531527_i32 : i32
    %c-2048144789_i32 = arith.constant -2048144789 : i32
    %11 = arith.addi %10, %c-2048144789_i32 : i32
    %12 = vector.broadcast %11 : i32 to vector<392x128xi32>
    %13 = arith.xori %8, %12 : vector<392x128xi32>
    %c16_i32 = arith.constant 16 : i32
    %14 = vector.broadcast %c16_i32 : i32 to vector<392x128xi32>
    %15 = arith.shrui %13, %14 : vector<392x128xi32>
    %16 = arith.xori %13, %15 : vector<392x128xi32>
    %c-2048144789_i32_2 = arith.constant -2048144789 : i32
    %17 = vector.broadcast %c-2048144789_i32_2 : i32 to vector<392x128xi32>
    %18 = arith.muli %16, %17 : vector<392x128xi32>
    %c13_i32 = arith.constant 13 : i32
    %19 = vector.broadcast %c13_i32 : i32 to vector<392x128xi32>
    %20 = arith.shrui %18, %19 : vector<392x128xi32>
    %21 = arith.xori %18, %20 : vector<392x128xi32>
    %c-1028477387_i32 = arith.constant -1028477387 : i32
    %22 = vector.broadcast %c-1028477387_i32 : i32 to vector<392x128xi32>
    %23 = arith.muli %21, %22 : vector<392x128xi32>
    %c16_i32_3 = arith.constant 16 : i32
    %24 = vector.broadcast %c16_i32_3 : i32 to vector<392x128xi32>
    %25 = arith.shrui %23, %24 : vector<392x128xi32>
    %26 = arith.xori %23, %25 : vector<392x128xi32>
    %c8_i32 = arith.constant 8 : i32
    %27 = vector.broadcast %c8_i32 : i32 to vector<392x128xi32>
    %28 = arith.shrui %26, %27 : vector<392x128xi32>
    %c1677721_i32 = arith.constant 1677721 : i32
    %29 = vector.broadcast %c1677721_i32 : i32 to vector<392x128xi32>
    %30 = arith.cmpi sge, %28, %29 : vector<392x128xi32>
    %cst = arith.constant 1.11111116 : f32
    %31 = vector.broadcast %cst : f32 to vector<392x128xf32>
    %32 = arith.mulf %0, %31 : vector<392x128xf32>
    %cst_4 = arith.constant 0.000000e+00 : f32
    %33 = vector.broadcast %cst_4 : f32 to vector<392x128xf32>
    %34 = arith.select %30, %32, %33 : vector<392x128xi1>, vector<392x128xf32>
    %c0_5 = arith.constant 0 : index
    %c0_6 = arith.constant 0 : index
    %35 = vector.load %arg3[%c0_5, %c0_6] : memref<392x128xf32, #tpu.memory_space<vmem>>, vector<392x128xf32>
    tpu.vector_store %arg3[%c0_5, %c0_6], %34 {strides = array<i32>} : memref<392x128xf32, #tpu.memory_space<vmem>>, vector<392x128xf32>,
    return
  }
  func.func @transform_0(%arg0: i32) -> i32 {
    %c0_i32 = arith.constant 0 : i32
    %c0_i32_0 = arith.constant 0 : i32
    return %c0_i32 : i32
  }
  func.func @transform_1(%arg0: i32) -> (i32, i32) {
    %c0_i32 = arith.constant 0 : i32
    %c0_i32_0 = arith.constant 0 : i32
    return %arg0, %c0_i32 : i32, i32
  }
  func.func @transform_2(%arg0: i32) -> (i32, i32) {
    %c0_i32 = arith.constant 0 : i32
    %c0_i32_0 = arith.constant 0 : i32
    return %arg0, %c0_i32 : i32, i32
  }
}

</mosaic_0001>

<llo_original>
// kernel: tpu_custom_call.1
$region0: #{tpu_custom_call.1}
  #allocation0 [shape = 'u32[]', space=smem, size = 0x4, offset = 0x4, fixed_abs, tag = 'smem constant byte address 0x4 - core index']
  #allocation1 [shape = 'u32[144,128]{1,0:T(1,128)}', space=vmem, size = 0x12000, scoped, tag = 'internal scratch']
  #allocation2 [shape = 's32[1]{0:T(128)S(6)}', space=smem, size = 0x200, scoped, tag = 'scoped memory for tpu_custom_call.1']
  %s0 = inlined_call_operand.<no memory space> [shape: s32[1], index: 0, kind: input, shape index: {}]
  %s1 = inlined_call_operand.hbm [shape: f32[1568,128], index: 1, kind: input, shape index: {}]
  %s2 = inlined_call_operand.hbm [shape: f32[1568,128], index: 2, kind: output, shape index: {}]
  %s3 = sld [smem:[#allocation0]]
  $region45: #{tpu_custom_call.1} parent=0
    _
  %s5 = ssub.s32 1, %s3
  %s6 = scalar_select 0, %s5, %s3
  %7 = sst [smem:[#allocation2]] %s0
  $region1: #{tpu_custom_call.1} parent=0
    #allocation3 [shape = 'u8[401408]{0}', space=vmem, size = 0x62000, scoped, tag = 'input window, operand 1']
    #allocation4 [shape = 's32[2]{0}', space=sflag, size = 0x8, scoped, tag = 'scoped memory for tpu_custom_call.1']
    #allocation5 [shape = 's32[2]{0}', space=sflag, size = 0x8, scoped, tag = 'scoped memory for tpu_custom_call.1']
    #allocation6 [shape = 'u8[401408]{0}', space=vmem, size = 0x62000, scoped, tag = 'output window, operand 0']
    %8 = vsyncpa [#allocation4], 0
    %s9 = scalar_lea.sflag [#allocation4], 1
    %10 = vsyncpa %s9, 0
    %11 = vsyncpa [#allocation5], 0
    %s12 = scalar_lea.sflag [#allocation5], 1
    %13 = vsyncpa %s12, 0
    loop: start=0, step=1, limit=6
    $region2: #{tpu_custom_call.1} parent=1 // loop_pre_header
      _
    $region3: #{tpu_custom_call.1} parent=1 // loop_header
      %s15 = sphi 0, %s19
      %p16 = scmp.ge.s32.totalorder %s15, 6
      %s23 = sphi 0, %s23
      %s25 = sphi 0, %s23
      %s26 = sphi 0, %s25
      %s40 = sphi 0, %s26
      %s46 = sphi 0, %s48
      %s49 = sphi 0, %s46
      %s50 = sphi 0, %s49
      %s66 = sphi 0, %s50
      %s72 = sphi 0, %s74
      %s75 = sphi 0, %s72
      %s76 = sphi 0, %s75
      %s92 = sphi 0, %s76
    $region4: #{tpu_custom_call.1} parent=1 // loop_header_branch
      %18 = sbr.rel (%p16) target = $region8
    $region5: #{tpu_custom_call.1} parent=1 // loop_body
      %s20 = ssub.s32 %s15, 1
      %s21 = ssub.s32 %s15, 2
      %s22 = sadd.s32 %s15, 1
      %s24 = sadd.s32 %s23, 1
      %p27 = scmp.eq.s32.totalorder %s15, 3
      %p28 = scmp.ne.s32.totalorder %s23, %s25
      %p29 = scmp.eq.s32.totalorder %s15, 0
      %p30 = por %p28, %p29
      %p31 = scmp.ne.s32.totalorder %s23, %s25
      %p32 = scmp.eq.s32.totalorder %s20, 3
      %p33 = por %p31, %p32
      %p34 = scmp.ne.s32.totalorder %s25, %s26
      %p35 = scmp.eq.s32.totalorder %s20, 0
      %p36 = por %p34, %p35
      %p37 = scmp.ne.s32.totalorder %s25, %s26
      %p38 = scmp.eq.s32.totalorder %s21, 3
      %p39 = por %p37, %p38
      %p41 = scmp.ne.s32.totalorder %s26, %s40
      %p42 = scmp.eq.s32.totalorder %s21, 0
      %p43 = por %p41, %p42
      %s44 = ssub.s32 %s15, %s22
      %p45 = scmp.eq.s32.totalorder %s44, 0
      %s47 = sadd.s32 %s46, 1
      %s48 = scalar_select %p45, %s46, %s47
      %p51 = pneg %p45
      %p52 = scmp.eq.s32.totalorder %s15, 3
      %p53 = por %p51, %p52
      %p54 = scmp.ne.s32.totalorder %s46, %s49
      %p55 = scmp.eq.s32.totalorder %s15, 0
      %p56 = por %p54, %p55
      %p57 = scmp.ne.s32.totalorder %s46, %s49
      %p58 = scmp.eq.s32.totalorder %s20, 3
      %p59 = por %p57, %p58
      %p60 = scmp.ne.s32.totalorder %s49, %s50
      %p61 = scmp.eq.s32.totalorder %s20, 0
      %p62 = por %p60, %p61
      %p63 = scmp.ne.s32.totalorder %s49, %s50
      %p64 = scmp.eq.s32.totalorder %s21, 3
      %p65 = por %p63, %p64
      %p67 = scmp.ne.s32.totalorder %s50, %s66
      %p68 = scmp.eq.s32.totalorder %s21, 0
      %p69 = por %p67, %p68
      %s70 = ssub.s32 %s15, %s22
      %p71 = scmp.eq.s32.totalorder %s70, 0
      %s73 = sadd.s32 %s72, 1
      %s74 = scalar_select %p71, %s72, %s73
      %p77 = pneg %p71
      %p78 = scmp.eq.s32.totalorder %s15, 3
      %p79 = por %p77, %p78
      %p80 = scmp.ne.s32.totalorder %s72, %s75
      %p81 = scmp.eq.s32.totalorder %s15, 0
      %p82 = por %p80, %p81
      %p83 = scmp.ne.s32.totalorder %s72, %s75
      %p84 = scmp.eq.s32.totalorder %s20, 3
      %p85 = por %p83, %p84
      %p86 = scmp.ne.s32.totalorder %s75, %s76
      %p87 = scmp.eq.s32.totalorder %s20, 0
      %p88 = por %p86, %p87
      %p89 = scmp.ne.s32.totalorder %s75, %s76
      %p90 = scmp.eq.s32.totalorder %s21, 3
      %p91 = por %p89, %p90
      %p93 = scmp.ne.s32.totalorder %s76, %s92
      %p94 = scmp.eq.s32.totalorder %s21, 0
      %p95 = por %p93, %p94
      %p96 = scmp.le.s32.totalorder 1, %s15
      %p97 = scmp.lt.s32.totalorder %s15, 5
      %p98 = pnand %p96, %p97
      %p99 = pneg %p98
      // Predicated region
      $region9: #{tpu_custom_call.1} parent=5 // pred_check
        _
      $region10: #{tpu_custom_call.1} parent=5 // pred_check_branch
        %101 = sbr.rel (%p98) target = $region12
      $region11: #{tpu_custom_call.1} parent=5 // pred_region
        %s102 = ssub.s32 %s15, 1
        // Predicated region
        $region13: #{tpu_custom_call.1} parent=11 // pred_check
          %p103 = pneg %p36
        $region14: #{tpu_custom_call.1} parent=11 // pred_check_branch
          %105 = sbr.rel (%p103) target = $region16
        $region15: #{tpu_custom_call.1} parent=11 // pred_region
          _
        $region16: #{tpu_custom_call.1} parent=11 // pred_fallthru
          _
      $region12: #{tpu_custom_call.1} parent=5 // pred_fallthru
        _
      %p106 = scmp.lt.s32.totalorder %s15, 4
      // Predicated region
      $region17: #{tpu_custom_call.1} parent=5 // pred_check
        %p107 = pneg %p106
      $region18: #{tpu_custom_call.1} parent=5 // pred_check_branch
        %109 = sbr.rel (%p107) target = $region20
      $region19: #{tpu_custom_call.1} parent=5 // pred_region
        // Predicated region
        $region21: #{tpu_custom_call.1} parent=19 // pred_check
          %p110 = pneg %p56
        $region22: #{tpu_custom_call.1} parent=19 // pred_check_branch
          %112 = sbr.rel (%p110) target = $region24
        $region23: #{tpu_custom_call.1} parent=19 // pred_region
          %s113 = sand.u32 %s46, 1
          %s114 = scalar_lea.sflag [#allocation4], %s113
          %s115 = sand.u32 %s46, 1
          %s116 = smul.addr %s115, 392
          %s117 = scalar_lea.vmem [#allocation3], %s116
          %s118 = smul.u32 49, %s15
          %s120 = ssub.s32 6272, 6272
          %121 = vsyncadd %s114, %s120
          %s122 = smul.addr %s118, 128
          %s123 = scalar_lea.hbm %s1, %s122
          %s124 = sshll.u32 %s117, 4
          %s125 = int_to_ptr.vmem [resolvable:$true] %s124
          %130 = dma.hbm_to_vmem [thread:$0]  %s123, 6272, %s125, %s114, 128, 128, 8
        $region24: #{tpu_custom_call.1} parent=19 // pred_fallthru
          _
      $region20: #{tpu_custom_call.1} parent=5 // pred_fallthru
        _
      %p131 = scmp.le.s32.totalorder 1, %s15
      %p132 = scmp.lt.s32.totalorder %s15, 5
      %p133 = pnand %p131, %p132
      %p134 = pneg %p133
      // Predicated region
      $region25: #{tpu_custom_call.1} parent=5 // pred_check
        _
      $region26: #{tpu_custom_call.1} parent=5 // pred_check_branch
        %136 = sbr.rel (%p133) target = $region28
      $region27: #{tpu_custom_call.1} parent=5 // pred_region
        %s137 = ssub.s32 %s15, 1
        %s138 = sand.u32 %s49, 1
        %s139 = scalar_lea.sflag [#allocation4], %s138
        %s140 = sand.u32 %s49, 1
        %s141 = smul.addr %s140, 392
        %s142 = scalar_lea.vmem [#allocation3], %s141
        // Predicated region
        $region29: #{tpu_custom_call.1} parent=27 // pred_check
          %p143 = pneg %p62
        $region30: #{tpu_custom_call.1} parent=27 // pred_check_branch
          %145 = sbr.rel (%p143) target = $region32
        $region31: #{tpu_custom_call.1} parent=27 // pred_region
          %146 = dma.done %s139, 6272
        $region32: #{tpu_custom_call.1} parent=27 // pred_fallthru
          _
        %p147 = pneg %p36
        %p148 = pneg %p33
        %s149 = sand.u32 %s49, 1
        %s150 = scalar_lea.sflag [#allocation4], %s149
        %s151 = sand.u32 %s49, 1
        %s152 = smul.addr %s151, 392
        %s153 = scalar_lea.vmem [#allocation3], %s152
        %p154 = pneg %p62
        %p155 = pneg %p59
        %p156 = pneg %p88
        %p157 = pneg %p85
        %s158 = sand.u32 %s75, 1
        %s159 = scalar_lea.sflag [#allocation5], %s158
        %s160 = sand.u32 %s75, 1
        %s161 = smul.addr %s160, 392
        %s162 = scalar_lea.vmem [#allocation6], %s161
        %s163 = smul.u32 49, %s20
        %s164 = smul.u32 49, %s20
        %v165 = vld [vmem:[%s142] sm:$0xff]
        %v166 = vld [vmem:[%s142 + $0x8] sm:$0xff]
        %v167 = vld [vmem:[%s142 + $0x10] sm:$0xff]
        %v168 = vld [vmem:[%s142 + $0x18] sm:$0xff]
        %v169 = vld [vmem:[%s142 + $0x20] sm:$0xff]
        %v170 = vld [vmem:[%s142 + $0x28] sm:$0xff]
        %v171 = vld [vmem:[%s142 + $0x30] sm:$0xff]
        %v172 = vld [vmem:[%s142 + $0x38] sm:$0xff]
        %v173 = vld [vmem:[%s142 + $0x40] sm:$0xff]
        %v174 = vld [vmem:[%s142 + $0x48] sm:$0xff]
        %v175 = vld [vmem:[%s142 + $0x50] sm:$0xff]
        %v176 = vld [vmem:[%s142 + $0x58] sm:$0xff]
        %v177 = vld [vmem:[%s142 + $0x60] sm:$0xff]
        %v178 = vld [vmem:[%s142 + $0x68] sm:$0xff]
        %v179 = vld [vmem:[%s142 + $0x70] sm:$0xff]
        %v180 = vld [vmem:[%s142 + $0x78] sm:$0xff]
        %v181 = vld [vmem:[%s142 + $0x80] sm:$0xff]
        %v182 = vld [vmem:[%s142 + $0x88] sm:$0xff]
        %v183 = vld [vmem:[%s142 + $0x90] sm:$0xff]
        %v184 = vld [vmem:[%s142 + $0x98] sm:$0xff]
        %v185 = vld [vmem:[%s142 + $0xa0] sm:$0xff]
        %v186 = vld [vmem:[%s142 + $0xa8] sm:$0xff]
        %v187 = vld [vmem:[%s142 + $0xb0] sm:$0xff]
        %v188 = vld [vmem:[%s142 + $0xb8] sm:$0xff]
        %v189 = vld [vmem:[%s142 + $0xc0] sm:$0xff]
        %v190 = vld [vmem:[%s142 + $0xc8] sm:$0xff]
        %v191 = vld [vmem:[%s142 + $0xd0] sm:$0xff]
        %v192 = vld [vmem:[%s142 + $0xd8] sm:$0xff]
        %v193 = vld [vmem:[%s142 + $0xe0] sm:$0xff]
        %v194 = vld [vmem:[%s142 + $0xe8] sm:$0xff]
        %v195 = vld [vmem:[%s142 + $0xf0] sm:$0xff]
        %v196 = vld [vmem:[%s142 + $0xf8] sm:$0xff]
        %v197 = vld [vmem:[%s142 + $0x100] sm:$0xff]
        %v198 = vld [vmem:[%s142 + $0x108] sm:$0xff]
        %v199 = vld [vmem:[%s142 + $0x110] sm:$0xff]
        %v200 = vld [vmem:[%s142 + $0x118] sm:$0xff]
        %v201 = vld [vmem:[%s142 + $0x120] sm:$0xff]
        %v202 = vld [vmem:[%s142 + $0x128] sm:$0xff]
        %v203 = vld [vmem:[%s142 + $0x130] sm:$0xff]
        %v204 = vld [vmem:[%s142 + $0x138] sm:$0xff]
        %v205 = vld [vmem:[%s142 + $0x140] sm:$0xff]
        %v206 = vld [vmem:[%s142 + $0x148] sm:$0xff]
        %v207 = vld [vmem:[%s142 + $0x150] sm:$0xff]
        %v208 = vld [vmem:[%s142 + $0x158] sm:$0xff]
        %v209 = vld [vmem:[%s142 + $0x160] sm:$0xff]
        %v210 = vld [vmem:[%s142 + $0x168] sm:$0xff]
        %v211 = vld [vmem:[%s142 + $0x170] sm:$0xff]
        %v212 = vld [vmem:[%s142 + $0x178] sm:$0xff]
        %v213 = vld [vmem:[%s142 + $0x180] sm:$0xff]
        %s214 = smul.u32 %s20, 50176
        %v215 = vlaneseq
        %v216 = vshrl.u32 %v215, 7
        %v217 = vadd.s32 %v216, 8
        %v218 = vadd.s32 %v216, 16
        %v219 = vadd.s32 %v216, 24
        %v220 = vadd.s32 %v216, 32
        %v221 = vadd.s32 %v216, 40
        %v222 = vadd.s32 %v216, 48
        %v223 = vadd.s32 %v216, 56
        %v224 = vadd.s32 %v216, 64
        %v225 = vadd.s32 %v216, 72
        %v226 = vadd.s32 %v216, 80
        %v227 = vadd.s32 %v216, 88
        %v228 = vadd.s32 %v216, 96
        %v229 = vadd.s32 %v216, 104
        %v230 = vadd.s32 %v216, 112
        %v231 = vadd.s32 %v216, 120
        %v232 = vadd.s32 %v216, 128
        %v233 = vadd.s32 %v216, 136
        %v234 = vadd.s32 %v216, 144
        %v235 = vadd.s32 %v216, 152
        %v236 = vadd.s32 %v216, 160
        %v237 = vadd.s32 %v216, 168
        %v238 = vadd.s32 %v216, 176
        %v239 = vadd.s32 %v216, 184
        %v240 = vadd.s32 %v216, 192
        %v241 = vadd.s32 %v216, 200
        %v242 = vadd.s32 %v216, 208
        %v243 = vadd.s32 %v216, 216
        %v244 = vadd.s32 %v216, 224
        %v245 = vadd.s32 %v216, 232
        %v246 = vadd.s32 %v216, 240
        %v247 = vadd.s32 %v216, 248
        %v248 = vadd.s32 %v216, 256
        %v249 = vadd.s32 %v216, 264
        %v250 = vadd.s32 %v216, 272
        %v251 = vadd.s32 %v216, 280
        %v252 = vadd.s32 %v216, 288
        %v253 = vadd.s32 %v216, 296
        %v254 = vadd.s32 %v216, 304
        %v255 = vadd.s32 %v216, 312
        %v256 = vadd.s32 %v216, 320
        %v257 = vadd.s32 %v216, 328
        %v258 = vadd.s32 %v216, 336
        %v259 = vadd.s32 %v216, 344
        %v260 = vadd.s32 %v216, 352
        %v261 = vadd.s32 %v216, 360
        %v262 = vadd.s32 %v216, 368
        %v263 = vadd.s32 %v216, 376
        %v264 = vadd.s32 %v216, 384
        %v265 = vlaneseq
        %v266 = vand.u32 %v265, 127
        %v267 = vmul.u32 %v216, 128
        %v268 = vmul.u32 %v217, 128
        %v269 = vmul.u32 %v218, 128
        %v270 = vmul.u32 %v219, 128
        %v271 = vmul.u32 %v220, 128
        %v272 = vmul.u32 %v221, 128
        %v273 = vmul.u32 %v222, 128
        %v274 = vmul.u32 %v223, 128
        %v275 = vmul.u32 %v224, 128
        %v276 = vmul.u32 %v225, 128
        %v277 = vmul.u32 %v226, 128
        %v278 = vmul.u32 %v227, 128
        %v279 = vmul.u32 %v228, 128
        %v280 = vmul.u32 %v229, 128
        %v281 = vmul.u32 %v230, 128
        %v282 = vmul.u32 %v231, 128
        %v283 = vmul.u32 %v232, 128
        %v284 = vmul.u32 %v233, 128
        %v285 = vmul.u32 %v234, 128
        %v286 = vmul.u32 %v235, 128
        %v287 = vmul.u32 %v236, 128
        %v288 = vmul.u32 %v237, 128
        %v289 = vmul.u32 %v238, 128
        %v290 = vmul.u32 %v239, 128
        %v291 = vmul.u32 %v240, 128
        %v292 = vmul.u32 %v241, 128
        %v293 = vmul.u32 %v242, 128
        %v294 = vmul.u32 %v243, 128
        %v295 = vmul.u32 %v244, 128
        %v296 = vmul.u32 %v245, 128
        %v297 = vmul.u32 %v246, 128
        %v298 = vmul.u32 %v247, 128
        %v299 = vmul.u32 %v248, 128
        %v300 = vmul.u32 %v249, 128
        %v301 = vmul.u32 %v250, 128
        %v302 = vmul.u32 %v251, 128
        %v303 = vmul.u32 %v252, 128
        %v304 = vmul.u32 %v253, 128
        %v305 = vmul.u32 %v254, 128
        %v306 = vmul.u32 %v255, 128
        %v307 = vmul.u32 %v256, 128
        %v308 = vmul.u32 %v257, 128
        %v309 = vmul.u32 %v258, 128
        %v310 = vmul.u32 %v259, 128
        %v311 = vmul.u32 %v260, 128
        %v312 = vmul.u32 %v261, 128
        %v313 = vmul.u32 %v262, 128
        %v314 = vmul.u32 %v263, 128
        %v315 = vmul.u32 %v264, 128
        %v316 = vstv %s214
        %v317 = vadd.s32 %v316, %v267
        %v318 = vadd.s32 %v316, %v268
        %v319 = vadd.s32 %v316, %v269
        %v320 = vadd.s32 %v316, %v270
        %v321 = vadd.s32 %v316, %v271
        %v322 = vadd.s32 %v316, %v272
        %v323 = vadd.s32 %v316, %v273
        %v324 = vadd.s32 %v316, %v274
        %v325 = vadd.s32 %v316, %v275
        %v326 = vadd.s32 %v316, %v276
        %v327 = vadd.s32 %v316, %v277
        %v328 = vadd.s32 %v316, %v278
        %v329 = vadd.s32 %v316, %v279
        %v330 = vadd.s32 %v316, %v280
        %v331 = vadd.s32 %v316, %v281
        %v332 = vadd.s32 %v316, %v282
        %v333 = vadd.s32 %v316, %v283
        %v334 = vadd.s32 %v316, %v284
        %v335 = vadd.s32 %v316, %v285
        %v336 = vadd.s32 %v316, %v286
        %v337 = vadd.s32 %v316, %v287
        %v338 = vadd.s32 %v316, %v288
        %v339 = vadd.s32 %v316, %v289
        %v340 = vadd.s32 %v316, %v290
        %v341 = vadd.s32 %v316, %v291
        %v342 = vadd.s32 %v316, %v292
        %v343 = vadd.s32 %v316, %v293
        %v344 = vadd.s32 %v316, %v294
        %v345 = vadd.s32 %v316, %v295
        %v346 = vadd.s32 %v316, %v296
        %v347 = vadd.s32 %v316, %v297
        %v348 = vadd.s32 %v316, %v298
        %v349 = vadd.s32 %v316, %v299
        %v350 = vadd.s32 %v316, %v300
        %v351 = vadd.s32 %v316, %v301
        %v352 = vadd.s32 %v316, %v302
        %v353 = vadd.s32 %v316, %v303
        %v354 = vadd.s32 %v316, %v304
        %v355 = vadd.s32 %v316, %v305
        %v356 = vadd.s32 %v316, %v306
        %v357 = vadd.s32 %v316, %v307
        %v358 = vadd.s32 %v316, %v308
        %v359 = vadd.s32 %v316, %v309
        %v360 = vadd.s32 %v316, %v310
        %v361 = vadd.s32 %v316, %v311
        %v362 = vadd.s32 %v316, %v312
        %v363 = vadd.s32 %v316, %v313
        %v364 = vadd.s32 %v316, %v314
        %v365 = vadd.s32 %v316, %v315
        %v366 = vadd.s32 %v317, %v266
        %v367 = vadd.s32 %v318, %v266
        %v368 = vadd.s32 %v319, %v266
        %v369 = vadd.s32 %v320, %v266
        %v370 = vadd.s32 %v321, %v266
        %v371 = vadd.s32 %v322, %v266
        %v372 = vadd.s32 %v323, %v266
        %v373 = vadd.s32 %v324, %v266
        %v374 = vadd.s32 %v325, %v266
        %v375 = vadd.s32 %v326, %v266
        %v376 = vadd.s32 %v327, %v266
        %v377 = vadd.s32 %v328, %v266
        %v378 = vadd.s32 %v329, %v266
        %v379 = vadd.s32 %v330, %v266
        %v380 = vadd.s32 %v331, %v266
        %v381 = vadd.s32 %v332, %v266
        %v382 = vadd.s32 %v333, %v266
        %v383 = vadd.s32 %v334, %v266
        %v384 = vadd.s32 %v335, %v266
        %v385 = vadd.s32 %v336, %v266
        %v386 = vadd.s32 %v337, %v266
        %v387 = vadd.s32 %v338, %v266
        %v388 = vadd.s32 %v339, %v266
        %v389 = vadd.s32 %v340, %v266
        %v390 = vadd.s32 %v341, %v266
        %v391 = vadd.s32 %v342, %v266
        %v392 = vadd.s32 %v343, %v266
        %v393 = vadd.s32 %v344, %v266
        %v394 = vadd.s32 %v345, %v266
        %v395 = vadd.s32 %v346, %v266
        %v396 = vadd.s32 %v347, %v266
        %v397 = vadd.s32 %v348, %v266
        %v398 = vadd.s32 %v349, %v266
        %v399 = vadd.s32 %v350, %v266
        %v400 = vadd.s32 %v351, %v266
        %v401 = vadd.s32 %v352, %v266
        %v402 = vadd.s32 %v353, %v266
        %v403 = vadd.s32 %v354, %v266
        %v404 = vadd.s32 %v355, %v266
        %v405 = vadd.s32 %v356, %v266
        %v406 = vadd.s32 %v357, %v266
        %v407 = vadd.s32 %v358, %v266
        %v408 = vadd.s32 %v359, %v266
        %v409 = vadd.s32 %v360, %v266
        %v410 = vadd.s32 %v361, %v266
        %v411 = vadd.s32 %v362, %v266
        %v412 = vadd.s32 %v363, %v266
        %v413 = vadd.s32 %v364, %v266
        %v414 = vadd.s32 %v365, %v266
        %s415 = sld [smem:[#allocation2]]
        %s416 = smul.u32 %s415, 2654435769
        %s417 = sadd.s32 %s416, 2246822507
        %v418 = vstv %s417
        %v419 = vxor.u32 %v366, %v418
        %v420 = vxor.u32 %v367, %v418
        %v421 = vxor.u32 %v368, %v418
        %v422 = vxor.u32 %v369, %v418
        %v423 = vxor.u32 %v370, %v418
        %v424 = vxor.u32 %v371, %v418
        %v425 = vxor.u32 %v372, %v418
        %v426 = vxor.u32 %v373, %v418
        %v427 = vxor.u32 %v374, %v418
        %v428 = vxor.u32 %v375, %v418
        %v429 = vxor.u32 %v376, %v418
        %v430 = vxor.u32 %v377, %v418
        %v431 = vxor.u32 %v378, %v418
        %v432 = vxor.u32 %v379, %v418
        %v433 = vxor.u32 %v380, %v418
        %v434 = vxor.u32 %v381, %v418
        %v435 = vxor.u32 %v382, %v418
        %v436 = vxor.u32 %v383, %v418
        %v437 = vxor.u32 %v384, %v418
        %v438 = vxor.u32 %v385, %v418
        %v439 = vxor.u32 %v386, %v418
        %v440 = vxor.u32 %v387, %v418
        %v441 = vxor.u32 %v388, %v418
        %v442 = vxor.u32 %v389, %v418
        %v443 = vxor.u32 %v390, %v418
        %v444 = vxor.u32 %v391, %v418
        %v445 = vxor.u32 %v392, %v418
        %v446 = vxor.u32 %v393, %v418
        %v447 = vxor.u32 %v394, %v418
        %v448 = vxor.u32 %v395, %v418
        %v449 = vxor.u32 %v396, %v418
        %v450 = vxor.u32 %v397, %v418
        %v451 = vxor.u32 %v398, %v418
        %v452 = vxor.u32 %v399, %v418
        %v453 = vxor.u32 %v400, %v418
        %v454 = vxor.u32 %v401, %v418
        %v455 = vxor.u32 %v402, %v418
        %v456 = vxor.u32 %v403, %v418
        %v457 = vxor.u32 %v404, %v418
        %v458 = vxor.u32 %v405, %v418
        %v459 = vxor.u32 %v406, %v418
        %v460 = vxor.u32 %v407, %v418
        %v461 = vxor.u32 %v408, %v418
        %v462 = vxor.u32 %v409, %v418
        %v463 = vxor.u32 %v410, %v418
        %v464 = vxor.u32 %v411, %v418
        %v465 = vxor.u32 %v412, %v418
        %v466 = vxor.u32 %v413, %v418
        %v467 = vxor.u32 %v414, %v418
        %v468 = vshrl.u32 %v419, 16
        %v469 = vshrl.u32 %v420, 16
        %v470 = vshrl.u32 %v421, 16
        %v471 = vshrl.u32 %v422, 16
        %v472 = vshrl.u32 %v423, 16
        %v473 = vshrl.u32 %v424, 16
        %v474 = vshrl.u32 %v425, 16
        %v475 = vshrl.u32 %v426, 16
        %v476 = vshrl.u32 %v427, 16
        %v477 = vshrl.u32 %v428, 16
        %v478 = vshrl.u32 %v429, 16
        %v479 = vshrl.u32 %v430, 16
        %v480 = vshrl.u32 %v431, 16
        %v481 = vshrl.u32 %v432, 16
        %v482 = vshrl.u32 %v433, 16
        %v483 = vshrl.u32 %v434, 16
        %v484 = vshrl.u32 %v435, 16
        %v485 = vshrl.u32 %v436, 16
        %v486 = vshrl.u32 %v437, 16
        %v487 = vshrl.u32 %v438, 16
        %v488 = vshrl.u32 %v439, 16
        %v489 = vshrl.u32 %v440, 16
        %v490 = vshrl.u32 %v441, 16
        %v491 = vshrl.u32 %v442, 16
        %v492 = vshrl.u32 %v443, 16
        %v493 = vshrl.u32 %v444, 16
        %v494 = vshrl.u32 %v445, 16
        %v495 = vshrl.u32 %v446, 16
        %v496 = vshrl.u32 %v447, 16
        %v497 = vshrl.u32 %v448, 16
        %v498 = vshrl.u32 %v449, 16
        %v499 = vshrl.u32 %v450, 16
        %v500 = vshrl.u32 %v451, 16
        %v501 = vshrl.u32 %v452, 16
        %v502 = vshrl.u32 %v453, 16
        %v503 = vshrl.u32 %v454, 16
        %v504 = vshrl.u32 %v455, 16
        %v505 = vshrl.u32 %v456, 16
        %v506 = vshrl.u32 %v457, 16
        %v507 = vshrl.u32 %v458, 16
        %v508 = vshrl.u32 %v459, 16
        %v509 = vshrl.u32 %v460, 16
        %v510 = vshrl.u32 %v461, 16
        %v511 = vshrl.u32 %v462, 16
        %v512 = vshrl.u32 %v463, 16
        %v513 = vshrl.u32 %v464, 16
        %v514 = vshrl.u32 %v465, 16
        %v515 = vshrl.u32 %v466, 16
        %v516 = vshrl.u32 %v467, 16
        %v517 = vxor.u32 %v419, %v468
        %v518 = vxor.u32 %v420, %v469
        %v519 = vxor.u32 %v421, %v470
        %v520 = vxor.u32 %v422, %v471
        %v521 = vxor.u32 %v423, %v472
        %v522 = vxor.u32 %v424, %v473
        %v523 = vxor.u32 %v425, %v474
        %v524 = vxor.u32 %v426, %v475
        %v525 = vxor.u32 %v427, %v476
        %v526 = vxor.u32 %v428, %v477
        %v527 = vxor.u32 %v429, %v478
        %v528 = vxor.u32 %v430, %v479
        %v529 = vxor.u32 %v431, %v480
        %v530 = vxor.u32 %v432, %v481
        %v531 = vxor.u32 %v433, %v482
        %v532 = vxor.u32 %v434, %v483
        %v533 = vxor.u32 %v435, %v484
        %v534 = vxor.u32 %v436, %v485
        %v535 = vxor.u32 %v437, %v486
        %v536 = vxor.u32 %v438, %v487
        %v537 = vxor.u32 %v439, %v488
        %v538 = vxor.u32 %v440, %v489
        %v539 = vxor.u32 %v441, %v490
        %v540 = vxor.u32 %v442, %v491
        %v541 = vxor.u32 %v443, %v492
        %v542 = vxor.u32 %v444, %v493
        %v543 = vxor.u32 %v445, %v494
        %v544 = vxor.u32 %v446, %v495
        %v545 = vxor.u32 %v447, %v496
        %v546 = vxor.u32 %v448, %v497
        %v547 = vxor.u32 %v449, %v498
        %v548 = vxor.u32 %v450, %v499
        %v549 = vxor.u32 %v451, %v500
        %v550 = vxor.u32 %v452, %v501
        %v551 = vxor.u32 %v453, %v502
        %v552 = vxor.u32 %v454, %v503
        %v553 = vxor.u32 %v455, %v504
        %v554 = vxor.u32 %v456, %v505
        %v555 = vxor.u32 %v457, %v506
        %v556 = vxor.u32 %v458, %v507
        %v557 = vxor.u32 %v459, %v508
        %v558 = vxor.u32 %v460, %v509
        %v559 = vxor.u32 %v461, %v510
        %v560 = vxor.u32 %v462, %v511
        %v561 = vxor.u32 %v463, %v512
        %v562 = vxor.u32 %v464, %v513
        %v563 = vxor.u32 %v465, %v514
        %v564 = vxor.u32 %v466, %v515
        %v565 = vxor.u32 %v467, %v516
        %v566 = vmul.u32 %v517, 2246822507
        %v567 = vmul.u32 %v518, 2246822507
        %v568 = vmul.u32 %v519, 2246822507
        %v569 = vmul.u32 %v520, 2246822507
        %v570 = vmul.u32 %v521, 2246822507
        %v571 = vmul.u32 %v522, 2246822507
        %v572 = vmul.u32 %v523, 2246822507
        %v573 = vmul.u32 %v524, 2246822507
        %v574 = vmul.u32 %v525, 2246822507
        %v575 = vmul.u32 %v526, 2246822507
        %v576 = vmul.u32 %v527, 2246822507
        %v577 = vmul.u32 %v528, 2246822507
        %v578 = vmul.u32 %v529, 2246822507
        %v579 = vmul.u32 %v530, 2246822507
        %v580 = vmul.u32 %v531, 2246822507
        %v581 = vmul.u32 %v532, 2246822507
        %v582 = vmul.u32 %v533, 2246822507
        %v583 = vmul.u32 %v534, 2246822507
        %v584 = vmul.u32 %v535, 2246822507
        %v585 = vmul.u32 %v536, 2246822507
        %v586 = vmul.u32 %v537, 2246822507
        %v587 = vmul.u32 %v538, 2246822507
        %v588 = vmul.u32 %v539, 2246822507
        %v589 = vmul.u32 %v540, 2246822507
        %v590 = vmul.u32 %v541, 2246822507
        %v591 = vmul.u32 %v542, 2246822507
        %v592 = vmul.u32 %v543, 2246822507
        %v593 = vmul.u32 %v544, 2246822507
        %v594 = vmul.u32 %v545, 2246822507
        %v595 = vmul.u32 %v546, 2246822507
        %v596 = vmul.u32 %v547, 2246822507
        %v597 = vmul.u32 %v548, 2246822507
        %v598 = vmul.u32 %v549, 2246822507
        %v599 = vmul.u32 %v550, 2246822507
        %v600 = vmul.u32 %v551, 2246822507
        %v601 = vmul.u32 %v552, 2246822507
        %v602 = vmul.u32 %v553, 2246822507
        %v603 = vmul.u32 %v554, 2246822507
        %v604 = vmul.u32 %v555, 2246822507
        %v605 = vmul.u32 %v556, 2246822507
        %v606 = vmul.u32 %v557, 2246822507
        %v607 = vmul.u32 %v558, 2246822507
        %v608 = vmul.u32 %v559, 2246822507
        %v609 = vmul.u32 %v560, 2246822507
        %v610 = vmul.u32 %v561, 2246822507
        %v611 = vmul.u32 %v562, 2246822507
        %v612 = vmul.u32 %v563, 2246822507
        %v613 = vmul.u32 %v564, 2246822507
        %v614 = vmul.u32 %v565, 2246822507
        %v615 = vshrl.u32 %v566, 13
        %v616 = vshrl.u32 %v567, 13
        %v617 = vshrl.u32 %v568, 13
        %v618 = vshrl.u32 %v569, 13
        %v619 = vshrl.u32 %v570, 13
        %v620 = vshrl.u32 %v571, 13
        %v621 = vshrl.u32 %v572, 13
        %v622 = vshrl.u32 %v573, 13
        %v623 = vshrl.u32 %v574, 13
        %v624 = vshrl.u32 %v575, 13
        %v625 = vshrl.u32 %v576, 13
        %v626 = vshrl.u32 %v577, 13
        %v627 = vshrl.u32 %v578, 13
        %v628 = vshrl.u32 %v579, 13
        %v629 = vshrl.u32 %v580, 13
        %v630 = vshrl.u32 %v581, 13
        %v631 = vshrl.u32 %v582, 13
        %v632 = vshrl.u32 %v583, 13
        %v633 = vshrl.u32 %v584, 13
        %v634 = vshrl.u32 %v585, 13
        %v635 = vshrl.u32 %v586, 13
        %v636 = vshrl.u32 %v587, 13
        %v637 = vshrl.u32 %v588, 13
        %v638 = vshrl.u32 %v589, 13
        %v639 = vshrl.u32 %v590, 13
        %v640 = vshrl.u32 %v591, 13
        %v641 = vshrl.u32 %v592, 13
        %v642 = vshrl.u32 %v593, 13
        %v643 = vshrl.u32 %v594, 13
        %v644 = vshrl.u32 %v595, 13
        %v645 = vshrl.u32 %v596, 13
        %v646 = vshrl.u32 %v597, 13
        %v647 = vshrl.u32 %v598, 13
        %v648 = vshrl.u32 %v599, 13
        %v649 = vshrl.u32 %v600, 13
        %v650 = vshrl.u32 %v601, 13
        %v651 = vshrl.u32 %v602, 13
        %v652 = vshrl.u32 %v603, 13
        %v653 = vshrl.u32 %v604, 13
        %v654 = vshrl.u32 %v605, 13
        %v655 = vshrl.u32 %v606, 13
        %v656 = vshrl.u32 %v607, 13
        %v657 = vshrl.u32 %v608, 13
        %v658 = vshrl.u32 %v609, 13
        %v659 = vshrl.u32 %v610, 13
        %v660 = vshrl.u32 %v611, 13
        %v661 = vshrl.u32 %v612, 13
        %v662 = vshrl.u32 %v613, 13
        %v663 = vshrl.u32 %v614, 13
        %v664 = vxor.u32 %v566, %v615
        %v665 = vxor.u32 %v567, %v616
        %v666 = vxor.u32 %v568, %v617
        %v667 = vxor.u32 %v569, %v618
        %v668 = vxor.u32 %v570, %v619
        %v669 = vxor.u32 %v571, %v620
        %v670 = vxor.u32 %v572, %v621
        %v671 = vxor.u32 %v573, %v622
        %v672 = vxor.u32 %v574, %v623
        %v673 = vxor.u32 %v575, %v624
        %v674 = vxor.u32 %v576, %v625
        %v675 = vxor.u32 %v577, %v626
        %v676 = vxor.u32 %v578, %v627
        %v677 = vxor.u32 %v579, %v628
        %v678 = vxor.u32 %v580, %v629
        %v679 = vxor.u32 %v581, %v630
        %v680 = vxor.u32 %v582, %v631
        %v681 = vxor.u32 %v583, %v632
        %v682 = vxor.u32 %v584, %v633
        %v683 = vxor.u32 %v585, %v634
        %v684 = vxor.u32 %v586, %v635
        %v685 = vxor.u32 %v587, %v636
        %v686 = vxor.u32 %v588, %v637
        %v687 = vxor.u32 %v589, %v638
        %v688 = vxor.u32 %v590, %v639
        %v689 = vxor.u32 %v591, %v640
        %v690 = vxor.u32 %v592, %v641
        %v691 = vxor.u32 %v593, %v642
        %v692 = vxor.u32 %v594, %v643
        %v693 = vxor.u32 %v595, %v644
        %v694 = vxor.u32 %v596, %v645
        %v695 = vxor.u32 %v597, %v646
        %v696 = vxor.u32 %v598, %v647
        %v697 = vxor.u32 %v599, %v648
        %v698 = vxor.u32 %v600, %v649
        %v699 = vxor.u32 %v601, %v650
        %v700 = vxor.u32 %v602, %v651
        %v701 = vxor.u32 %v603, %v652
        %v702 = vxor.u32 %v604, %v653
        %v703 = vxor.u32 %v605, %v654
        %v704 = vxor.u32 %v606, %v655
        %v705 = vxor.u32 %v607, %v656
        %v706 = vxor.u32 %v608, %v657
        %v707 = vxor.u32 %v609, %v658
        %v708 = vxor.u32 %v610, %v659
        %v709 = vxor.u32 %v611, %v660
        %v710 = vxor.u32 %v612, %v661
        %v711 = vxor.u32 %v613, %v662
        %v712 = vxor.u32 %v614, %v663
        %v713 = vmul.u32 %v664, 3266489909
        %v714 = vmul.u32 %v665, 3266489909
        %v715 = vmul.u32 %v666, 3266489909
        %v716 = vmul.u32 %v667, 3266489909
        %v717 = vmul.u32 %v668, 3266489909
        %v718 = vmul.u32 %v669, 3266489909
        %v719 = vmul.u32 %v670, 3266489909
        %v720 = vmul.u32 %v671, 3266489909
        %v721 = vmul.u32 %v672, 3266489909
        %v722 = vmul.u32 %v673, 3266489909
        %v723 = vmul.u32 %v674, 3266489909
        %v724 = vmul.u32 %v675, 3266489909
        %v725 = vmul.u32 %v676, 3266489909
        %v726 = vmul.u32 %v677, 3266489909
        %v727 = vmul.u32 %v678, 3266489909
        %v728 = vmul.u32 %v679, 3266489909
        %v729 = vmul.u32 %v680, 3266489909
        %v730 = vmul.u32 %v681, 3266489909
        %v731 = vmul.u32 %v682, 3266489909
        %v732 = vmul.u32 %v683, 3266489909
        %v733 = vmul.u32 %v684, 3266489909
        %v734 = vmul.u32 %v685, 3266489909
        %v735 = vmul.u32 %v686, 3266489909
        %v736 = vmul.u32 %v687, 3266489909
        %v737 = vmul.u32 %v688, 3266489909
        %v738 = vmul.u32 %v689, 3266489909
        %v739 = vmul.u32 %v690, 3266489909
        %v740 = vmul.u32 %v691, 3266489909
        %v741 = vmul.u32 %v692, 3266489909
        %v742 = vmul.u32 %v693, 3266489909
        %v743 = vmul.u32 %v694, 3266489909
        %v744 = vmul.u32 %v695, 3266489909
        %v745 = vmul.u32 %v696, 3266489909
        %v746 = vmul.u32 %v697, 3266489909
        %v747 = vmul.u32 %v698, 3266489909
        %v748 = vmul.u32 %v699, 3266489909
        %v749 = vmul.u32 %v700, 3266489909
        %v750 = vmul.u32 %v701, 3266489909
        %v751 = vmul.u32 %v702, 3266489909
        %v752 = vmul.u32 %v703, 3266489909
        %v753 = vmul.u32 %v704, 3266489909
        %v754 = vmul.u32 %v705, 3266489909
        %v755 = vmul.u32 %v706, 3266489909
        %v756 = vmul.u32 %v707, 3266489909
        %v757 = vmul.u32 %v708, 3266489909
        %v758 = vmul.u32 %v709, 3266489909
        %v759 = vmul.u32 %v710, 3266489909
        %v760 = vmul.u32 %v711, 3266489909
        %v761 = vmul.u32 %v712, 3266489909
        %v762 = vshrl.u32 %v713, 16
        %v763 = vshrl.u32 %v714, 16
        %v764 = vshrl.u32 %v715, 16
        %v765 = vshrl.u32 %v716, 16
        %v766 = vshrl.u32 %v717, 16
        %v767 = vshrl.u32 %v718, 16
        %v768 = vshrl.u32 %v719, 16
        %v769 = vshrl.u32 %v720, 16
        %v770 = vshrl.u32 %v721, 16
        %v771 = vshrl.u32 %v722, 16
        %v772 = vshrl.u32 %v723, 16
        %v773 = vshrl.u32 %v724, 16
        %v774 = vshrl.u32 %v725, 16
        %v775 = vshrl.u32 %v726, 16
        %v776 = vshrl.u32 %v727, 16
        %v777 = vshrl.u32 %v728, 16
        %v778 = vshrl.u32 %v729, 16
        %v779 = vshrl.u32 %v730, 16
        %v780 = vshrl.u32 %v731, 16
        %v781 = vshrl.u32 %v732, 16
        %v782 = vshrl.u32 %v733, 16
        %v783 = vshrl.u32 %v734, 16
        %v784 = vshrl.u32 %v735, 16
        %v785 = vshrl.u32 %v736, 16
        %v786 = vshrl.u32 %v737, 16
        %v787 = vshrl.u32 %v738, 16
        %v788 = vshrl.u32 %v739, 16
        %v789 = vshrl.u32 %v740, 16
        %v790 = vshrl.u32 %v741, 16
        %v791 = vshrl.u32 %v742, 16
        %v792 = vshrl.u32 %v743, 16
        %v793 = vshrl.u32 %v744, 16
        %v794 = vshrl.u32 %v745, 16
        %v795 = vshrl.u32 %v746, 16
        %v796 = vshrl.u32 %v747, 16
        %v797 = vshrl.u32 %v748, 16
        %v798 = vshrl.u32 %v749, 16
        %v799 = vshrl.u32 %v750, 16
        %v800 = vshrl.u32 %v751, 16
        %v801 = vshrl.u32 %v752, 16
        %v802 = vshrl.u32 %v753, 16
        %v803 = vshrl.u32 %v754, 16
        %v804 = vshrl.u32 %v755, 16
        %v805 = vshrl.u32 %v756, 16
        %v806 = vshrl.u32 %v757, 16
        %v807 = vshrl.u32 %v758, 16
        %v808 = vshrl.u32 %v759, 16
        %v809 = vshrl.u32 %v760, 16
        %v810 = vshrl.u32 %v761, 16
        %v811 = vxor.u32 %v713, %v762
        %v812 = vxor.u32 %v714, %v763
        %v813 = vxor.u32 %v715, %v764
        %v814 = vxor.u32 %v716, %v765
        %v815 = vxor.u32 %v717, %v766
        %v816 = vxor.u32 %v718, %v767
        %v817 = vxor.u32 %v719, %v768
        %v818 = vxor.u32 %v720, %v769
        %v819 = vxor.u32 %v721, %v770
        %v820 = vxor.u32 %v722, %v771
        %v821 = vxor.u32 %v723, %v772
        %v822 = vxor.u32 %v724, %v773
        %v823 = vxor.u32 %v725, %v774
        %v824 = vxor.u32 %v726, %v775
        %v825 = vxor.u32 %v727, %v776
        %v826 = vxor.u32 %v728, %v777
        %v827 = vxor.u32 %v729, %v778
        %v828 = vxor.u32 %v730, %v779
        %v829 = vxor.u32 %v731, %v780
        %v830 = vxor.u32 %v732, %v781
        %v831 = vxor.u32 %v733, %v782
        %v832 = vxor.u32 %v734, %v783
        %v833 = vxor.u32 %v735, %v784
        %v834 = vxor.u32 %v736, %v785
        %v835 = vxor.u32 %v737, %v786
        %v836 = vxor.u32 %v738, %v787
        %v837 = vxor.u32 %v739, %v788
        %v838 = vxor.u32 %v740, %v789
        %v839 = vxor.u32 %v741, %v790
        %v840 = vxor.u32 %v742, %v791
        %v841 = vxor.u32 %v743, %v792
        %v842 = vxor.u32 %v744, %v793
        %v843 = vxor.u32 %v745, %v794
        %v844 = vxor.u32 %v746, %v795
        %v845 = vxor.u32 %v747, %v796
        %v846 = vxor.u32 %v748, %v797
        %v847 = vxor.u32 %v749, %v798
        %v848 = vxor.u32 %v750, %v799
        %v849 = vxor.u32 %v751, %v800
        %v850 = vxor.u32 %v752, %v801
        %v851 = vxor.u32 %v753, %v802
        %v852 = vxor.u32 %v754, %v803
        %v853 = vxor.u32 %v755, %v804
        %v854 = vxor.u32 %v756, %v805
        %v855 = vxor.u32 %v757, %v806
        %v856 = vxor.u32 %v758, %v807
        %v857 = vxor.u32 %v759, %v808
        %v858 = vxor.u32 %v760, %v809
        %v859 = vxor.u32 %v761, %v810
        %v860 = vshrl.u32 %v811, 8
        %v861 = vshrl.u32 %v812, 8
        %v862 = vshrl.u32 %v813, 8
        %v863 = vshrl.u32 %v814, 8
        %v864 = vshrl.u32 %v815, 8
        %v865 = vshrl.u32 %v816, 8
        %v866 = vshrl.u32 %v817, 8
        %v867 = vshrl.u32 %v818, 8
        %v868 = vshrl.u32 %v819, 8
        %v869 = vshrl.u32 %v820, 8
        %v870 = vshrl.u32 %v821, 8
        %v871 = vshrl.u32 %v822, 8
        %v872 = vshrl.u32 %v823, 8
        %v873 = vshrl.u32 %v824, 8
        %v874 = vshrl.u32 %v825, 8
        %v875 = vshrl.u32 %v826, 8
        %v876 = vshrl.u32 %v827, 8
        %v877 = vshrl.u32 %v828, 8
        %v878 = vshrl.u32 %v829, 8
        %v879 = vshrl.u32 %v830, 8
        %v880 = vshrl.u32 %v831, 8
        %v881 = vshrl.u32 %v832, 8
        %v882 = vshrl.u32 %v833, 8
        %v883 = vshrl.u32 %v834, 8
        %v884 = vshrl.u32 %v835, 8
        %v885 = vshrl.u32 %v836, 8
        %v886 = vshrl.u32 %v837, 8
        %v887 = vshrl.u32 %v838, 8
        %v888 = vshrl.u32 %v839, 8
        %v889 = vshrl.u32 %v840, 8
        %v890 = vshrl.u32 %v841, 8
        %v891 = vshrl.u32 %v842, 8
        %v892 = vshrl.u32 %v843, 8
        %v893 = vshrl.u32 %v844, 8
        %v894 = vshrl.u32 %v845, 8
        %v895 = vshrl.u32 %v846, 8
        %v896 = vshrl.u32 %v847, 8
        %v897 = vshrl.u32 %v848, 8
        %v898 = vshrl.u32 %v849, 8
        %v899 = vshrl.u32 %v850, 8
        %v900 = vshrl.u32 %v851, 8
        %v901 = vshrl.u32 %v852, 8
        %v902 = vshrl.u32 %v853, 8
        %v903 = vshrl.u32 %v854, 8
        %v904 = vshrl.u32 %v855, 8
        %v905 = vshrl.u32 %v856, 8
        %v906 = vshrl.u32 %v857, 8
        %v907 = vshrl.u32 %v858, 8
        %v908 = vshrl.u32 %v859, 8
        %vm909 = vcmp.ge.s32.totalorder %v860, 1677721
        %vm910 = vcmp.ge.s32.totalorder %v861, 1677721
        %vm911 = vcmp.ge.s32.totalorder %v862, 1677721
        %vm912 = vcmp.ge.s32.totalorder %v863, 1677721
        %vm913 = vcmp.ge.s32.totalorder %v864, 1677721
        %vm914 = vcmp.ge.s32.totalorder %v865, 1677721
        %vm915 = vcmp.ge.s32.totalorder %v866, 1677721
        %vm916 = vcmp.ge.s32.totalorder %v867, 1677721
        %vm917 = vcmp.ge.s32.totalorder %v868, 1677721
        %vm918 = vcmp.ge.s32.totalorder %v869, 1677721
        %vm919 = vcmp.ge.s32.totalorder %v870, 1677721
        %vm920 = vcmp.ge.s32.totalorder %v871, 1677721
        %vm921 = vcmp.ge.s32.totalorder %v872, 1677721
        %vm922 = vcmp.ge.s32.totalorder %v873, 1677721
        %vm923 = vcmp.ge.s32.totalorder %v874, 1677721
        %vm924 = vcmp.ge.s32.totalorder %v875, 1677721
        %vm925 = vcmp.ge.s32.totalorder %v876, 1677721
        %vm926 = vcmp.ge.s32.totalorder %v877, 1677721
        %vm927 = vcmp.ge.s32.totalorder %v878, 1677721
        %vm928 = vcmp.ge.s32.totalorder %v879, 1677721
        %vm929 = vcmp.ge.s32.totalorder %v880, 1677721
        %vm930 = vcmp.ge.s32.totalorder %v881, 1677721
        %vm931 = vcmp.ge.s32.totalorder %v882, 1677721
        %vm932 = vcmp.ge.s32.totalorder %v883, 1677721
        %vm933 = vcmp.ge.s32.totalorder %v884, 1677721
        %vm934 = vcmp.ge.s32.totalorder %v885, 1677721
        %vm935 = vcmp.ge.s32.totalorder %v886, 1677721
        %vm936 = vcmp.ge.s32.totalorder %v887, 1677721
        %vm937 = vcmp.ge.s32.totalorder %v888, 1677721
        %vm938 = vcmp.ge.s32.totalorder %v889, 1677721
        %vm939 = vcmp.ge.s32.totalorder %v890, 1677721
        %vm940 = vcmp.ge.s32.totalorder %v891, 1677721
        %vm941 = vcmp.ge.s32.totalorder %v892, 1677721
        %vm942 = vcmp.ge.s32.totalorder %v893, 1677721
        %vm943 = vcmp.ge.s32.totalorder %v894, 1677721
        %vm944 = vcmp.ge.s32.totalorder %v895, 1677721
        %vm945 = vcmp.ge.s32.totalorder %v896, 1677721
        %vm946 = vcmp.ge.s32.totalorder %v897, 1677721
        %vm947 = vcmp.ge.s32.totalorder %v898, 1677721
        %vm948 = vcmp.ge.s32.totalorder %v899, 1677721
        %vm949 = vcmp.ge.s32.totalorder %v900, 1677721
        %vm950 = vcmp.ge.s32.totalorder %v901, 1677721
        %vm951 = vcmp.ge.s32.totalorder %v902, 1677721
        %vm952 = vcmp.ge.s32.totalorder %v903, 1677721
        %vm953 = vcmp.ge.s32.totalorder %v904, 1677721
        %vm954 = vcmp.ge.s32.totalorder %v905, 1677721
        %vm955 = vcmp.ge.s32.totalorder %v906, 1677721
        %vm956 = vcmp.ge.s32.totalorder %v907, 1677721
        %vm957 = vcmp.ge.s32.totalorder %v908, 1677721
        %v958 = vmul.f32 %v165, 1.1111112
        %v959 = vmul.f32 %v166, 1.1111112
        %v960 = vmul.f32 %v167, 1.1111112
        %v961 = vmul.f32 %v168, 1.1111112
        %v962 = vmul.f32 %v169, 1.1111112
        %v963 = vmul.f32 %v170, 1.1111112
        %v964 = vmul.f32 %v171, 1.1111112
        %v965 = vmul.f32 %v172, 1.1111112
        %v966 = vmul.f32 %v173, 1.1111112
        %v967 = vmul.f32 %v174, 1.1111112
        %v968 = vmul.f32 %v175, 1.1111112
        %v969 = vmul.f32 %v176, 1.1111112
        %v970 = vmul.f32 %v177, 1.1111112
        %v971 = vmul.f32 %v178, 1.1111112
        %v972 = vmul.f32 %v179, 1.1111112
        %v973 = vmul.f32 %v180, 1.1111112
        %v974 = vmul.f32 %v181, 1.1111112
        %v975 = vmul.f32 %v182, 1.1111112
        %v976 = vmul.f32 %v183, 1.1111112
        %v977 = vmul.f32 %v184, 1.1111112
        %v978 = vmul.f32 %v185, 1.1111112
        %v979 = vmul.f32 %v186, 1.1111112
        %v980 = vmul.f32 %v187, 1.1111112
        %v981 = vmul.f32 %v188, 1.1111112
        %v982 = vmul.f32 %v189, 1.1111112
        %v983 = vmul.f32 %v190, 1.1111112
        %v984 = vmul.f32 %v191, 1.1111112
        %v985 = vmul.f32 %v192, 1.1111112
        %v986 = vmul.f32 %v193, 1.1111112
        %v987 = vmul.f32 %v194, 1.1111112
        %v988 = vmul.f32 %v195, 1.1111112
        %v989 = vmul.f32 %v196, 1.1111112
        %v990 = vmul.f32 %v197, 1.1111112
        %v991 = vmul.f32 %v198, 1.1111112
        %v992 = vmul.f32 %v199, 1.1111112
        %v993 = vmul.f32 %v200, 1.1111112
        %v994 = vmul.f32 %v201, 1.1111112
        %v995 = vmul.f32 %v202, 1.1111112
        %v996 = vmul.f32 %v203, 1.1111112
        %v997 = vmul.f32 %v204, 1.1111112
        %v998 = vmul.f32 %v205, 1.1111112
        %v999 = vmul.f32 %v206, 1.1111112
        %v1000 = vmul.f32 %v207, 1.1111112
        %v1001 = vmul.f32 %v208, 1.1111112
        %v1002 = vmul.f32 %v209, 1.1111112
        %v1003 = vmul.f32 %v210, 1.1111112
        %v1004 = vmul.f32 %v211, 1.1111112
        %v1005 = vmul.f32 %v212, 1.1111112
        %v1006 = vmul.f32 %v213, 1.1111112
        %v1007 = vsel %vm909, %v958, 0.0
        %v1008 = vsel %vm910, %v959, 0.0
        %v1009 = vsel %vm911, %v960, 0.0
        %v1010 = vsel %vm912, %v961, 0.0
        %v1011 = vsel %vm913, %v962, 0.0
        %v1012 = vsel %vm914, %v963, 0.0
        %v1013 = vsel %vm915, %v964, 0.0
        %v1014 = vsel %vm916, %v965, 0.0
        %v1015 = vsel %vm917, %v966, 0.0
        %v1016 = vsel %vm918, %v967, 0.0
        %v1017 = vsel %vm919, %v968, 0.0
        %v1018 = vsel %vm920, %v969, 0.0
        %v1019 = vsel %vm921, %v970, 0.0
        %v1020 = vsel %vm922, %v971, 0.0
        %v1021 = vsel %vm923, %v972, 0.0
        %v1022 = vsel %vm924, %v973, 0.0
        %v1023 = vsel %vm925, %v974, 0.0
        %v1024 = vsel %vm926, %v975, 0.0
        %v1025 = vsel %vm927, %v976, 0.0
        %v1026 = vsel %vm928, %v977, 0.0
        %v1027 = vsel %vm929, %v978, 0.0
        %v1028 = vsel %vm930, %v979, 0.0
        %v1029 = vsel %vm931, %v980, 0.0
        %v1030 = vsel %vm932, %v981, 0.0
        %v1031 = vsel %vm933, %v982, 0.0
        %v1032 = vsel %vm934, %v983, 0.0
        %v1033 = vsel %vm935, %v984, 0.0
        %v1034 = vsel %vm936, %v985, 0.0
        %v1035 = vsel %vm937, %v986, 0.0
        %v1036 = vsel %vm938, %v987, 0.0
        %v1037 = vsel %vm939, %v988, 0.0
        %v1038 = vsel %vm940, %v989, 0.0
        %v1039 = vsel %vm941, %v990, 0.0
        %v1040 = vsel %vm942, %v991, 0.0
        %v1041 = vsel %vm943, %v992, 0.0
        %v1042 = vsel %vm944, %v993, 0.0
        %v1043 = vsel %vm945, %v994, 0.0
        %v1044 = vsel %vm946, %v995, 0.0
        %v1045 = vsel %vm947, %v996, 0.0
        %v1046 = vsel %vm948, %v997, 0.0
        %v1047 = vsel %vm949, %v998, 0.0
        %v1048 = vsel %vm950, %v999, 0.0
        %v1049 = vsel %vm951, %v1000, 0.0
        %v1050 = vsel %vm952, %v1001, 0.0
        %v1051 = vsel %vm953, %v1002, 0.0
        %v1052 = vsel %vm954, %v1003, 0.0
        %v1053 = vsel %vm955, %v1004, 0.0
        %v1054 = vsel %vm956, %v1005, 0.0
        %v1055 = vsel %vm957, %v1006, 0.0
        %1056 = vst [vmem:[%s162] sm:$0xff] %v1007
        %1057 = vst [vmem:[%s162 + $0x8] sm:$0xff] %v1008
        %1058 = vst [vmem:[%s162 + $0x10] sm:$0xff] %v1009
        %1059 = vst [vmem:[%s162 + $0x18] sm:$0xff] %v1010
        %1060 = vst [vmem:[%s162 + $0x20] sm:$0xff] %v1011
        %1061 = vst [vmem:[%s162 + $0x28] sm:$0xff] %v1012
        %1062 = vst [vmem:[%s162 + $0x30] sm:$0xff] %v1013
        %1063 = vst [vmem:[%s162 + $0x38] sm:$0xff] %v1014
        %1064 = vst [vmem:[%s162 + $0x40] sm:$0xff] %v1015
        %1065 = vst [vmem:[%s162 + $0x48] sm:$0xff] %v1016
        %1066 = vst [vmem:[%s162 + $0x50] sm:$0xff] %v1017
        %1067 = vst [vmem:[%s162 + $0x58] sm:$0xff] %v1018
        %1068 = vst [vmem:[%s162 + $0x60] sm:$0xff] %v1019
        %1069 = vst [vmem:[%s162 + $0x68] sm:$0xff] %v1020
        %1070 = vst [vmem:[%s162 + $0x70] sm:$0xff] %v1021
        %1071 = vst [vmem:[%s162 + $0x78] sm:$0xff] %v1022
        %1072 = vst [vmem:[%s162 + $0x80] sm:$0xff] %v1023
        %1073 = vst [vmem:[%s162 + $0x88] sm:$0xff] %v1024
        %1074 = vst [vmem:[%s162 + $0x90] sm:$0xff] %v1025
        %1075 = vst [vmem:[%s162 + $0x98] sm:$0xff] %v1026
        %1076 = vst [vmem:[%s162 + $0xa0] sm:$0xff] %v1027
        %1077 = vst [vmem:[%s162 + $0xa8] sm:$0xff] %v1028
        %1078 = vst [vmem:[%s162 + $0xb0] sm:$0xff] %v1029
        %1079 = vst [vmem:[%s162 + $0xb8] sm:$0xff] %v1030
        %1080 = vst [vmem:[%s162 + $0xc0] sm:$0xff] %v1031
        %1081 = vst [vmem:[%s162 + $0xc8] sm:$0xff] %v1032
        %1082 = vst [vmem:[%s162 + $0xd0] sm:$0xff] %v1033
        %1083 = vst [vmem:[%s162 + $0xd8] sm:$0xff] %v1034
        %1084 = vst [vmem:[%s162 + $0xe0] sm:$0xff] %v1035
        %1085 = vst [vmem:[%s162 + $0xe8] sm:$0xff] %v1036
        %1086 = vst [vmem:[%s162 + $0xf0] sm:$0xff] %v1037
        %1087 = vst [vmem:[%s162 + $0xf8] sm:$0xff] %v1038
        %1088 = vst [vmem:[%s162 + $0x100] sm:$0xff] %v1039
        %1089 = vst [vmem:[%s162 + $0x108] sm:$0xff] %v1040
        %1090 = vst [vmem:[%s162 + $0x110] sm:$0xff] %v1041
        %1091 = vst [vmem:[%s162 + $0x118] sm:$0xff] %v1042
        %1092 = vst [vmem:[%s162 + $0x120] sm:$0xff] %v1043
        %1093 = vst [vmem:[%s162 + $0x128] sm:$0xff] %v1044
        %1094 = vst [vmem:[%s162 + $0x130] sm:$0xff] %v1045
        %1095 = vst [vmem:[%s162 + $0x138] sm:$0xff] %v1046
        %1096 = vst [vmem:[%s162 + $0x140] sm:$0xff] %v1047
        %1097 = vst [vmem:[%s162 + $0x148] sm:$0xff] %v1048
        %1098 = vst [vmem:[%s162 + $0x150] sm:$0xff] %v1049
        %1099 = vst [vmem:[%s162 + $0x158] sm:$0xff] %v1050
        %1100 = vst [vmem:[%s162 + $0x160] sm:$0xff] %v1051
        %1101 = vst [vmem:[%s162 + $0x168] sm:$0xff] %v1052
        %1102 = vst [vmem:[%s162 + $0x170] sm:$0xff] %v1053
        %1103 = vst [vmem:[%s162 + $0x178] sm:$0xff] %v1054
        %1104 = vst [vmem:[%s162 + $0x180] sm:$0xff] %v1055
        %s1105 = sand.u32 %s75, 1
        %s1106 = scalar_lea.sflag [#allocation5], %s1105
        %s1107 = sand.u32 %s75, 1
        %s1108 = smul.addr %s1107, 392
        %s1109 = scalar_lea.vmem [#allocation6], %s1108
        // Predicated region
        $region33: #{tpu_custom_call.1} parent=27 // pred_check
          %p1110 = pneg %p85
        $region34: #{tpu_custom_call.1} parent=27 // pred_check_branch
          %1112 = sbr.rel (%p1110) target = $region36
        $region35: #{tpu_custom_call.1} parent=27 // pred_region
          %s1113 = smul.u32 49, %s20
          %s1115 = ssub.s32 6272, 6272
          %1116 = vsyncadd %s1106, %s1115
          %s1117 = smul.addr %s1113, 128
          %s1118 = scalar_lea.hbm %s2, %s1117
          %s1119 = sshll.u32 %s1109, 4
          %s1120 = int_to_ptr.vmem [resolvable:$true] %s1119
          %1125 = dma.vmem_to_hbm [thread:$0]  %s1120, 6272, %s1118, %s1106, 128, 128, 8
        $region36: #{tpu_custom_call.1} parent=27 // pred_fallthru
          _
      $region28: #{tpu_custom_call.1} parent=5 // pred_fallthru
        _
      %p1126 = scmp.le.s32.totalorder 2, %s15
      // Predicated region
      $region37: #{tpu_custom_call.1} parent=5 // pred_check
        %p1127 = pneg %p1126
      $region38: #{tpu_custom_call.1} parent=5 // pred_check_branch
        %1129 = sbr.rel (%p1127) target = $region40
      $region39: #{tpu_custom_call.1} parent=5 // pred_region
        %s1130 = ssub.s32 %s15, 2
        // Predicated region
        $region41: #{tpu_custom_call.1} parent=39 // pred_check
          %p1131 = pneg %p91
        $region42: #{tpu_custom_call.1} parent=39 // pred_check_branch
          %1133 = sbr.rel (%p1131) target = $region44
        $region43: #{tpu_custom_call.1} parent=39 // pred_region
          %s1134 = sand.u32 %s76, 1
          %s1135 = scalar_lea.sflag [#allocation5], %s1134
          %s1136 = sand.u32 %s76, 1
          %s1137 = smul.addr %s1136, 392
          %s1138 = scalar_lea.vmem [#allocation6], %s1137
          %1139 = dma.done %s1135, 6272
        $region44: #{tpu_custom_call.1} parent=39 // pred_fallthru
          _
      $region40: #{tpu_custom_call.1} parent=5 // pred_fallthru
        _
    $region6: #{tpu_custom_call.1} parent=1 // loop_footer
      %s19 = sadd.s32 1, %s15
    $region7: #{tpu_custom_call.1} parent=1 // loop_footer_branch
      %14 = sbr.rel target = $region3
    $region8: #{tpu_custom_call.1} parent=1 // loop_exit
      _
    %1140 = vsyncpa [#allocation4], 1
    %s1141 = scalar_lea.sflag [#allocation4], 1
    %1142 = vsyncpa %s1141, 1
    %1143 = vsyncpa [#allocation5], 1
    %s1144 = scalar_lea.sflag [#allocation5], 1
    %1145 = vsyncpa %s1144, 1

</llo_original>
